<compile_context>
chip_gen: v7x
topology: tpu7x:2x2x1
jax: 0.10.0
libtpu: 0.0.40
codegen_flags: <defaults>
</compile_context>

<pallas_src>
import numpy as np
import jax
import jax.numpy as jnp
from jax.experimental import pallas as pl
from jax.experimental.pallas import tpu as pltpu

MASK = (1.0, 1.0, 0.0, 0.0)
LANE = 128  # pad every minor dim to the TPU lane width


# ---------------------------------------------------------------------------
# Kernel 1: the out_linear_layer MLP (Linear -> Tanh -> Linear), run once.
#   x  : [tm, IN_PAD]  bf16   w1 : [IN_PAD, N_PAD] bf16   b1 : [1, N_PAD] f32
#   w2 : [N_PAD, N_PAD] bf16  b2 : [1, N_PAD] f32 (last lane == 1.0)
#   rhs: [tm, N_PAD]   bf16
def mlp_kernel(x_ref, w1_ref, b1_ref, w2_ref, b2_ref, rhs_ref):
    h = jnp.tanh(jnp.dot(x_ref[...], w1_ref[...],
                         preferred_element_type=jnp.float32) + b1_ref[...])
    emb = jnp.dot(h.astype(jnp.bfloat16), w2_ref[...],
                  preferred_element_type=jnp.float32) + b2_ref[...]
    # w2's padded last column is 0 and b2's last lane is 1.0, so emb[:, -1] is
    # exactly 1.0: the aggregation matmul's last output column becomes
    # Wm_scaled @ 1 == row_sum (fused, no extra MXU pass, no iota/where).
    rhs_ref[...] = emb.astype(jnp.bfloat16)


def mlp_pallas(x_bf16, w1, b1, w2, b2, *, tm=128):
    bp, in_pad = x_bf16.shape
    n_pad = w1.shape[1]
    tm = min(tm, bp)
    assert bp % tm == 0
    return pl.pallas_call(
        mlp_kernel,
        out_shape=jax.ShapeDtypeStruct((bp, n_pad), jnp.bfloat16),
        grid=(bp // tm,),
        in_specs=[
            pl.BlockSpec((tm, in_pad), lambda i: (i, 0)),      # x row tile
            pl.BlockSpec((in_pad, n_pad), lambda i: (0, 0)),   # w1
            pl.BlockSpec((1, n_pad), lambda i: (0, 0)),        # b1
            pl.BlockSpec((n_pad, n_pad), lambda i: (0, 0)),    # w2
            pl.BlockSpec((1, n_pad), lambda i: (0, 0)),        # b2
        ],
        out_specs=pl.BlockSpec((tm, n_pad), lambda i: (i, 0)),
        compiler_params=pltpu.CompilerParams(
            dimension_semantics=("parallel",)),
    )(x_bf16, w1, b1, w2, b2)


# ---------------------------------------------------------------------------
# Kernel 2: weighted-mean aggregation.  Pure streaming bf16 matmul with an
# f32 accumulator, fused row_sum (last rhs column == 1) and EUP reciprocal.
#   wm  : [tm, tk]    bf16   (row/K tile of deg-scaled dense edge matrix)
#   rhs : [tk, N_PAD] bf16   (MLP output, last column == 1)
#   out : [tm, N_PAD] f32
def agg_kernel(wm_ref, rhs_ref, out_ref, acc_ref):
    k = pl.program_id(1)

    @pl.when(k == 0)
    def _():
        acc_ref[...] = jnp.zeros_like(acc_ref)

    acc_ref[...] += jnp.dot(wm_ref[...], rhs_ref[...],
                            preferred_element_type=jnp.float32)

    @pl.when(k == pl.num_programs(1) - 1)
    def _():
        agg = acc_ref[...]
        n = agg.shape[1]
        row_sum = agg[:, n - 1:n]                       # == Wm_scaled @ 1
        row_sum = jnp.where(row_sum == 0.0, 1.0, row_sum)
        # EUP reciprocal (separate VLIW slot) instead of a VALU divide; store
        # is a lane-dense unmasked 128-wide vst (padded cols sliced off later).
        out_ref[...] = agg * pl.reciprocal(row_sum, approx=True)


def mean_aggregate_pallas(wm_scaled_bf16, rhs_bf16, *, tm=64, tk=512):
    # tm=64 at B_pad=128 -> grid=(2, 1): row tiles split across the two
    # TensorCores on v7x.  At large B_pad sweep tm up to 256-512 (lower cap on
    # v7x, 64 MiB VMEM) and raise vmem_limit_bytes; tk bounds VMEM growth in K.
    bp, bk = wm_scaled_bf16.shape
    n_pad = rhs_bf16.shape[1]
    tm = min(tm, bp)
    tk = min(tk, bk)
    assert bp % tm == 0 and bk % tk == 0
    return pl.pallas_call(
        agg_kernel,
        out_shape=jax.ShapeDtypeStruct((bp, n_pad), jnp.float32),
        grid=(bp // tm, bk // tk),
        in_specs=[
            # If the profile shows exposed DMA on wm at scale, add
            # pipeline_mode=pl.Buffered(3) on this spec only.
            pl.BlockSpec((tm, tk), lambda i, k: (i, k)),       # wm tile
            pl.BlockSpec((tk, n_pad), lambda i, k: (k, 0)),    # rhs K tile
        ],
        out_specs=pl.BlockSpec((tm, n_pad), lambda i, k: (i, 0)),
        scratch_shapes=[pltpu.VMEM((tm, n_pad), jnp.float32)],
        compiler_params=pltpu.CompilerParams(
            dimension_semantics=("parallel", "arbitrary")),
    )(wm_scaled_bf16, rhs_bf16)


# ---------------------------------------------------------------------------
# Host-side data-dependent preprocessing; mirrors the torch forward.
# TODO(synk): for large, genuinely sparse graphs replace the dense Wm
# materialization with a PrefetchScalarGridSpec gather-based formulation
# (per-row neighbor index lists in SMEM) instead of an O(B^2) dense matmul;
# at the demo size the host numpy + H2D of Wm dominates, not the kernel.
def build_batch_operands(nodes, adj, W, ind, node_num):
    nodes = np.asarray(nodes, dtype=np.int64)
    sub = adj[nodes, :]
    r, c = np.nonzero(sub)
    if r.size:
        edges = np.stack([nodes[r], c], axis=1)
    else:
        edges = np.zeros((0, 2), dtype=np.int64)
    unique_nodes = np.unique(np.hstack([edges.reshape(-1), nodes]))
    B = len(unique_nodes)
    lut = np.zeros(node_num, dtype=np.int32)            # unique_nodes_dict
    lut[unique_nodes] = np.arange(B, dtype=np.int32)
    uu = lut[edges[:, 0]]
    vv = lut[edges[:, 1]]
    wvals = W[edges[:, 0], edges[:, 1]].astype(np.float32)
    avals = np.where(uu == vv, np.float32(MASK[ind]), np.float32(1.0))
    # masked node degree = row-sum of the COO indicator (what spmm(coo, 1) does)
    deg = np.zeros(B, dtype=np.float32)
    np.add.at(deg, uu, avals)
    Wm = np.zeros((B, B), dtype=np.float32)
    Wm[uu, vv] = wvals
    # Fold deg into Wm on the host: matrix[i, j] = Wm[i, j] * deg[j].
    wm_scaled = Wm * deg[None, :]
    return unique_nodes, lut, wm_scaled


if __name__ == "__main__":
    node_num, in_dim, out_dim = 24, 32, 32
    key = jax.random.PRNGKey(0)
    k_feat, k_adj, k_w, k1, k2, k3, k4 = jax.random.split(key, 7)

    # "features" modeled as a deterministic embedding table [node_num, in_dim]
    feat_table = jax.random.normal(k_feat, (node_num, in_dim), jnp.float32)
    adj_np = np.array(jax.random.bernoulli(k_adj, 0.25, (node_num, node_num)),
                      dtype=np.float32)
    np.fill_diagonal(adj_np, 1.0)          # self-loops (exercise mask[ind])
    W_np = np.array(jax.random.uniform(k_w, (node_num, node_num),
                                       jnp.float32, 0.1, 1.0))

    # MLP parameters (deterministic synthetic init)
    w1 = jax.random.normal(k1, (in_dim, out_dim), jnp.float32) / np.sqrt(in_dim)
    b1 = jax.random.normal(k2, (1, out_dim), jnp.float32) * 0.01
    w2 = jax.random.normal(k3, (out_dim, out_dim), jnp.float32) / np.sqrt(out_dim)
    b2 = jax.random.normal(k4, (1, out_dim), jnp.float32) * 0.01

    nodes = [0, 3, 5, 7, 9, 11, 13, 17]
    ind = 2                                # mask[2] == 0 -> self-loops masked in degree

    unique_nodes, lut, Wm_scaled = build_batch_operands(
        nodes, adj_np, W_np, ind, node_num)
    B = len(unique_nodes)
    BP = 128                               # pad batch; padded rows/cols inert

    # Lane-dense, zero-padded operands.
    X = np.zeros((BP, LANE), np.float32)
    X[:B, :in_dim] = np.asarray(feat_table)[unique_nodes]
    w1_p = np.zeros((LANE, LANE), np.float32); w1_p[:in_dim, :out_dim] = np.asarray(w1)
    b1_p = np.zeros((1, LANE), np.float32);    b1_p[:, :out_dim] = np.asarray(b1)
    w2_p = np.zeros((LANE, LANE), np.float32); w2_p[:out_dim, :out_dim] = np.asarray(w2)
    b2_p = np.zeros((1, LANE), np.float32);    b2_p[:, :out_dim] = np.asarray(b2)
    b2_p[0, LANE - 1] = 1.0                # fused row_sum column (w2 col is 0)
    wm_p = np.zeros((BP, BP), np.float32); wm_p[:B, :B] = Wm_scaled

    # bf16 operands (f32 accumulation inside the kernels).
    x_bf = jnp.asarray(X).astype(jnp.bfloat16)
    w1_bf = jnp.asarray(w1_p).astype(jnp.bfloat16)
    w2_bf = jnp.asarray(w2_p).astype(jnp.bfloat16)
    b1_j = jnp.asarray(b1_p)
    b2_j = jnp.asarray(b2_p)
    wm_bf = jnp.asarray(wm_p).astype(jnp.bfloat16)

    rhs = mlp_pallas(x_bf, w1_bf, b1_j, w2_bf, b2_j)            # [BP, LANE] bf16
    out_pad = mean_aggregate_pallas(wm_bf, rhs)                 # [BP, LANE] f32
    out_pad = jax.block_until_ready(out_pad)
    out = np.asarray(out_pad)[:, :out_dim][lut[np.asarray(nodes)]]

    # Pure-numpy reference of the dense-equivalent forward pass, rounding the
    # same operands to bf16 that the kernels do (f32 accumulation in both).
    def bf16_round(a):
        return np.asarray(jnp.asarray(a, jnp.float32)
                          .astype(jnp.bfloat16).astype(jnp.float32))

    x_r = bf16_round(X[:B, :in_dim])
    w1_r = bf16_round(np.asarray(w1))
    w2_r = bf16_round(np.asarray(w2))
    h_ref = np.tanh(x_r @ w1_r + np.asarray(b1))
    emb_ref = bf16_round(h_ref) @ w2_r + np.asarray(b2)
    rhs_ref = bf16_round(emb_ref)
    wm_ref = bf16_round(Wm_scaled)
    results = wm_ref @ rhs_ref
    row_sum = wm_ref @ np.ones((B, 1), np.float32)
    row_sum = np.where(row_sum == 0.0, 1.0, row_sum)
    ref = (results / row_sum)[lut[np.asarray(nodes)]]

    # Tolerance covers the approx EUP reciprocal, tanh ULP differences and
    # residual bf16 accumulation-order effects.
    err = float(np.max(np.abs(out - ref)))
    assert np.allclose(out, ref, rtol=2e-2, atol=2e-2), err
    print("KERNEL_OK")
</pallas_src>

<mosaic_0001>
module attributes {stable_mosaic.version = 11 : i64} {
  func.func @mlp_kernel(%arg0: i32, %arg1: memref<128x128xbf16, #tpu.memory_space<vmem>>, %arg2: memref<128x128xbf16, #tpu.memory_space<vmem>>, %arg3: memref<1x128xf32, #tpu.memory_space<vmem>>, %arg4: memref<128x128xbf16, #tpu.memory_space<vmem>>, %arg5: memref<1x128xf32, #tpu.memory_space<vmem>>, %arg6: memref<128x128xbf16, #tpu.memory_space<vmem>>) attributes {dimension_semantics = [#tpu.dimension_semantics<parallel>], iteration_bounds = array<i64: 1>, scalar_prefetch = 0 : i64, scratch_operands = 0 : i64, tpu.core_type = #tpu.core_type<tc>, window_params = [{transform_indices = @transform_0, window_bounds = array<i64: 128, 128>}, {pipeline_mode = #tpu.pipeline_mode<synchronous>, transform_indices = @transform_1, window_bounds = array<i64: 128, 128>}, {pipeline_mode = #tpu.pipeline_mode<synchronous>, transform_indices = @transform_2, window_bounds = array<i64: 1, 128>}, {pipeline_mode = #tpu.pipeline_mode<synchronous>, transform_indices = @transform_3, window_bounds = array<i64: 128, 128>}, {pipeline_mode = #tpu.pipeline_mode<synchronous>, transform_indices = @transform_4, window_bounds = array<i64: 1, 128>}, {transform_indices = @transform_5, window_bounds = array<i64: 128, 128>}]} {
    %c0 = arith.constant 0 : index
    %c0_0 = arith.constant 0 : index
    %0 = vector.load %arg1[%c0, %c0_0] : memref<128x128xbf16, #tpu.memory_space<vmem>>, vector<128x128xbf16>
    %c0_1 = arith.constant 0 : index
    %c0_2 = arith.constant 0 : index
    %1 = vector.load %arg2[%c0_1, %c0_2] : memref<128x128xbf16, #tpu.memory_space<vmem>>, vector<128x128xbf16>
    %cst = arith.constant dense<0.000000e+00> : vector<128x128xf32>
    %2 = tpu.matmul %0, %1, %cst {dimension_numbers = #tpu.dot_dimension_numbers<[1], [0], [0], [1], [0, 0, 1, 1], [], []>} : vector<128x128xbf16>, vector<128x128xbf16>, vector<128x128xf32> -> vector<128x128xf32>
    %c0_3 = arith.constant 0 : index
    %c0_4 = arith.constant 0 : index
    %3 = vector.load %arg3[%c0_3, %c0_4] : memref<1x128xf32, #tpu.memory_space<vmem>>, vector<1x128xf32>
    %4 = vector.broadcast %3 : vector<1x128xf32> to vector<128x128xf32>
    %5 = arith.addf %2, %4 : vector<128x128xf32>
    %6 = math.tanh %5 : vector<128x128xf32>
    %7 = arith.truncf %6 : vector<128x128xf32> to vector<128x128xbf16>
    %c0_5 = arith.constant 0 : index
    %c0_6 = arith.constant 0 : index
    %8 = vector.load %arg4[%c0_5, %c0_6] : memref<128x128xbf16, #tpu.memory_space<vmem>>, vector<128x128xbf16>
    %cst_7 = arith.constant dense<0.000000e+00> : vector<128x128xf32>
    %9 = tpu.matmul %7, %8, %cst_7 {dimension_numbers = #tpu.dot_dimension_numbers<[1], [0], [0], [1], [0, 0, 1, 1], [], []>} : vector<128x128xbf16>, vector<128x128xbf16>, vector<128x128xf32> -> vector<128x128xf32>
    %c0_8 = arith.constant 0 : index
    %c0_9 = arith.constant 0 : index
    %10 = vector.load %arg5[%c0_8, %c0_9] : memref<1x128xf32, #tpu.memory_space<vmem>>, vector<1x128xf32>
    %11 = vector.broadcast %10 : vector<1x128xf32> to vector<128x128xf32>
    %12 = arith.addf %9, %11 : vector<128x128xf32>
    %13 = arith.truncf %12 : vector<128x128xf32> to vector<128x128xbf16>
    %c0_10 = arith.constant 0 : index
    %c0_11 = arith.constant 0 : index
    %14 = vector.load %arg6[%c0_10, %c0_11] : memref<128x128xbf16, #tpu.memory_space<vmem>>, vector<128x128xbf16>
    tpu.vector_store %arg6[%c0_10, %c0_11], %13 {strides = array<i32>} : memref<128x128xbf16, #tpu.memory_space<vmem>>, vector<128x128xbf16>,
    return
  }
  func.func @transform_0(%arg0: i32) -> (i32, i32) {
    %c0_i32 = arith.constant 0 : i32
    %c0_i32_0 = arith.constant 0 : i32
    return %arg0, %c0_i32 : i32, i32
  }
  func.func @transform_1(%arg0: i32) -> (i32, i32) {
    %c0_i32 = arith.constant 0 : i32
    %c0_i32_0 = arith.constant 0 : i32
    %c0_i32_1 = arith.constant 0 : i32
    return %c0_i32, %c0_i32_0 : i32, i32
  }
  func.func @transform_2(%arg0: i32) -> (i32, i32) {
    %c0_i32 = arith.constant 0 : i32
    %c0_i32_0 = arith.constant 0 : i32
    %c0_i32_1 = arith.constant 0 : i32
    return %c0_i32, %c0_i32_0 : i32, i32
  }
  func.func @transform_3(%arg0: i32) -> (i32, i32) {
    %c0_i32 = arith.constant 0 : i32
    %c0_i32_0 = arith.constant 0 : i32
    %c0_i32_1 = arith.constant 0 : i32
    return %c0_i32, %c0_i32_0 : i32, i32
  }
  func.func @transform_4(%arg0: i32) -> (i32, i32) {
    %c0_i32 = arith.constant 0 : i32
    %c0_i32_0 = arith.constant 0 : i32
    %c0_i32_1 = arith.constant 0 : i32
    return %c0_i32, %c0_i32_0 : i32, i32
  }
  func.func @transform_5(%arg0: i32) -> (i32, i32) {
    %c0_i32 = arith.constant 0 : i32
    %c0_i32_0 = arith.constant 0 : i32
    return %arg0, %c0_i32 : i32, i32
  }
}

</mosaic_0001>

<llo_original>
// kernel: tpu_custom_call.1
$region0: #{tpu_custom_call.1}
  #allocation0 [shape = 'u32[]', space=smem, size = 0x4, offset = 0x4, fixed_abs, tag = 'smem constant byte address 0x4 - core index']
  #allocation1 [shape = 'u32[144,128]{1,0:T(1,128)}', space=vmem, size = 0x12000, scoped, tag = 'internal scratch']
  %s0 = inlined_call_operand.hbm [shape: bf16[128,128], index: 0, kind: input, shape index: {}]
  %s1 = inlined_call_operand.hbm [shape: bf16[128,128], index: 1, kind: input, shape index: {}]
  %s2 = inlined_call_operand.vmem [shape: f32[1,128], index: 2, kind: input, shape index: {}]
  %s3 = inlined_call_operand.hbm [shape: bf16[128,128], index: 3, kind: input, shape index: {}]
  %s4 = inlined_call_operand.vmem [shape: f32[1,128], index: 4, kind: input, shape index: {}]
  %s5 = inlined_call_operand.hbm [shape: bf16[128,128], index: 5, kind: output, shape index: {}]
  %s6 = sld [smem:[#allocation0]]
  $region42: #{tpu_custom_call.1} parent=0
    _
  %s8 = ssub.s32 1, %s6
  %s9 = scalar_select 0, %s8, %s6
  $region1: #{tpu_custom_call.1} parent=0
    #allocation2 [shape = 'u8[32768]{0}', space=vmem, size = 0x8000, scoped, tag = 'input window, operand 0, single buffered']
    #allocation3 [shape = 's32[1]{0}', space=sflag, size = 0x4, scoped, tag = 'scoped memory for tpu_custom_call.1']
    #allocation4 [shape = 's32[1]{0}', space=sflag, size = 0x4, scoped, tag = 'scoped memory for tpu_custom_call.1']
    #allocation5 [shape = 'u8[32768]{0}', space=vmem, size = 0x8000, scoped, tag = 'input window, operand 1, single buffered']
    #allocation6 [shape = 's32[1]{0}', space=sflag, size = 0x4, scoped, tag = 'scoped memory for tpu_custom_call.1']
    #allocation7 [shape = 'u8[32768]{0}', space=vmem, size = 0x8000, scoped, tag = 'input window, operand 3, single buffered']
    #allocation8 [shape = 'u8[32768]{0}', space=vmem, size = 0x8000, scoped, tag = 'output window, operand 0, single buffered']
    %10 = vsyncpa [#allocation3], 0
    %11 = vsyncpa [#allocation6], 0
    %12 = vsyncpa [#allocation4], 0
    // Predicated region
    $region2: #{tpu_custom_call.1} parent=1 // pred_check
      _
    $region3: #{tpu_custom_call.1} parent=1 // pred_check_branch
      %14 = sbr.rel (0) target = $region5
    $region4: #{tpu_custom_call.1} parent=1 // pred_region
      %s16 = ssub.s32 1024, 1024
      %17 = vsyncadd [#allocation3], %s16
      %s18 = sshll.u32 [#allocation2], 4
      %s19 = int_to_ptr.vmem [resolvable:$true] %s18
      %24 = dma.hbm_to_vmem [thread:$0]  %s0, 1024, %s19, [#allocation3], 64, 64, 4
    $region5: #{tpu_custom_call.1} parent=1 // pred_fallthru
      _
    // Predicated region
    $region6: #{tpu_custom_call.1} parent=1 // pred_check
      _
    $region7: #{tpu_custom_call.1} parent=1 // pred_check_branch
      %26 = sbr.rel (0) target = $region9
    $region8: #{tpu_custom_call.1} parent=1 // pred_region
      %s28 = ssub.s32 1024, 1024
      %29 = vsyncadd [#allocation6], %s28
      %s30 = sshll.u32 [#allocation5], 4
      %s31 = int_to_ptr.vmem [resolvable:$true] %s30
      %36 = dma.hbm_to_vmem [thread:$0]  %s1, 1024, %s31, [#allocation6], 64, 64, 4
    $region9: #{tpu_custom_call.1} parent=1 // pred_fallthru
      _
    // Predicated region
    $region10: #{tpu_custom_call.1} parent=1 // pred_check
      _
    $region11: #{tpu_custom_call.1} parent=1 // pred_check_branch
      %38 = sbr.rel (0) target = $region13
    $region12: #{tpu_custom_call.1} parent=1 // pred_region
      _
    $region13: #{tpu_custom_call.1} parent=1 // pred_fallthru
      _
    // Predicated region
    $region14: #{tpu_custom_call.1} parent=1 // pred_check
      _
    $region15: #{tpu_custom_call.1} parent=1 // pred_check_branch
      %40 = sbr.rel (0) target = $region17
    $region16: #{tpu_custom_call.1} parent=1 // pred_region
      %s42 = ssub.s32 1024, 1024
      %43 = vsyncadd [#allocation6], %s42
      %s44 = sshll.u32 [#allocation7], 4
      %s45 = int_to_ptr.vmem [resolvable:$true] %s44
      %50 = dma.hbm_to_vmem [thread:$0]  %s3, 1024, %s45, [#allocation6], 64, 64, 4
    $region17: #{tpu_custom_call.1} parent=1 // pred_fallthru
      _
    // Predicated region
    $region18: #{tpu_custom_call.1} parent=1 // pred_check
      _
    $region19: #{tpu_custom_call.1} parent=1 // pred_check_branch
      %52 = sbr.rel (0) target = $region21
    $region20: #{tpu_custom_call.1} parent=1 // pred_region
      _
    $region21: #{tpu_custom_call.1} parent=1 // pred_fallthru
      _
    // Predicated region
    $region22: #{tpu_custom_call.1} parent=1 // pred_check
      _
    $region23: #{tpu_custom_call.1} parent=1 // pred_check_branch
      %54 = sbr.rel (0) target = $region25
    $region24: #{tpu_custom_call.1} parent=1 // pred_region
      %55 = dma.done [#allocation3], 1024
    $region25: #{tpu_custom_call.1} parent=1 // pred_fallthru
      _
    // Predicated region
    $region26: #{tpu_custom_call.1} parent=1 // pred_check
      _
    $region27: #{tpu_custom_call.1} parent=1 // pred_check_branch
      %57 = sbr.rel (0) target = $region29
    $region28: #{tpu_custom_call.1} parent=1 // pred_region
      %58 = dma.done [#allocation6], 1024
    $region29: #{tpu_custom_call.1} parent=1 // pred_fallthru
      _
    // Predicated region
    $region30: #{tpu_custom_call.1} parent=1 // pred_check
      _
    $region31: #{tpu_custom_call.1} parent=1 // pred_check_branch
      %60 = sbr.rel (0) target = $region33
    $region32: #{tpu_custom_call.1} parent=1 // pred_region
      %61 = dma.done [#allocation6], 1024
    $region33: #{tpu_custom_call.1} parent=1 // pred_fallthru
      _
    %v63 = vld [vmem:[#allocation2] sm:$0xf]
    %v64 = vld [vmem:[#allocation2 + $0x4] sm:$0xf]
    %v65 = vld [vmem:[#allocation2 + $0x8] sm:$0xf]
    %v66 = vld [vmem:[#allocation2 + $0xc] sm:$0xf]
    %v67 = vld [vmem:[#allocation2 + $0x10] sm:$0xf]
    %v68 = vld [vmem:[#allocation2 + $0x14] sm:$0xf]
    %v69 = vld [vmem:[#allocation2 + $0x18] sm:$0xf]
    %v70 = vld [vmem:[#allocation2 + $0x1c] sm:$0xf]
    %v71 = vld [vmem:[#allocation2 + $0x20] sm:$0xf]
    %v72 = vld [vmem:[#allocation2 + $0x24] sm:$0xf]
    %v73 = vld [vmem:[#allocation2 + $0x28] sm:$0xf]
    %v74 = vld [vmem:[#allocation2 + $0x2c] sm:$0xf]
    %v75 = vld [vmem:[#allocation2 + $0x30] sm:$0xf]
    %v76 = vld [vmem:[#allocation2 + $0x34] sm:$0xf]
    %v77 = vld [vmem:[#allocation2 + $0x38] sm:$0xf]
    %v78 = vld [vmem:[#allocation2 + $0x3c] sm:$0xf]
    %v79 = vld [vmem:[#allocation5] sm:$0xf]
    %v80 = vld [vmem:[#allocation5 + $0x4] sm:$0xf]
    %v81 = vld [vmem:[#allocation5 + $0x8] sm:$0xf]
    %v82 = vld [vmem:[#allocation5 + $0xc] sm:$0xf]
    %v83 = vld [vmem:[#allocation5 + $0x10] sm:$0xf]
    %v84 = vld [vmem:[#allocation5 + $0x14] sm:$0xf]
    %v85 = vld [vmem:[#allocation5 + $0x18] sm:$0xf]
    %v86 = vld [vmem:[#allocation5 + $0x1c] sm:$0xf]
    %v87 = vld [vmem:[#allocation5 + $0x20] sm:$0xf]
    %v88 = vld [vmem:[#allocation5 + $0x24] sm:$0xf]
    %v89 = vld [vmem:[#allocation5 + $0x28] sm:$0xf]
    %v90 = vld [vmem:[#allocation5 + $0x2c] sm:$0xf]
    %v91 = vld [vmem:[#allocation5 + $0x30] sm:$0xf]
    %v92 = vld [vmem:[#allocation5 + $0x34] sm:$0xf]
    %v93 = vld [vmem:[#allocation5 + $0x38] sm:$0xf]
    %v94 = vld [vmem:[#allocation5 + $0x3c] sm:$0xf]
    %v95 = vld [vmem:[%s2] sm:$0x1]
    %v97 = vlaneseq
    %v98 = vshrl.u32 %v97, 7
    %v99 = vsub.s32 0, %v98
    %v100 = vrot.slane %v95, %v99
    %v118 = vunpack.c.l.b16 %v63
    %v119 = vunpack.c.l.b16 %v64
    %v120 = vunpack.c.l.b16 %v65
    %v121 = vunpack.c.l.b16 %v66
    %v122 = vunpack.c.l.b16 %v67
    %v123 = vunpack.c.l.b16 %v68
    %v124 = vunpack.c.l.b16 %v69
    %v125 = vunpack.c.l.b16 %v70
    %v126 = vunpack.c.l.b16 %v71
    %v127 = vunpack.c.l.b16 %v72
    %v128 = vunpack.c.l.b16 %v73
    %v129 = vunpack.c.l.b16 %v74
    %v130 = vunpack.c.l.b16 %v75
    %v131 = vunpack.c.l.b16 %v76
    %v132 = vunpack.c.l.b16 %v77
    %v133 = vunpack.c.l.b16 %v78
    %v134 = vpack.c.b16 %v119, %v118
    %v135 = vpack.c.b16 %v121, %v120
    %v136 = vpack.c.b16 %v123, %v122
    %v137 = vpack.c.b16 %v125, %v124
    %v138 = vpack.c.b16 %v127, %v126
    %v139 = vpack.c.b16 %v129, %v128
    %v140 = vpack.c.b16 %v131, %v130
    %v141 = vpack.c.b16 %v133, %v132
    %v166 = vunpack.c.l.b16 %v79
    %v167 = vunpack.c.l.b16 %v80
    %v168 = vunpack.c.l.b16 %v81
    %v169 = vunpack.c.l.b16 %v82
    %v170 = vunpack.c.l.b16 %v83
    %v171 = vunpack.c.l.b16 %v84
    %v172 = vunpack.c.l.b16 %v85
    %v173 = vunpack.c.l.b16 %v86
    %v174 = vunpack.c.l.b16 %v87
    %v175 = vunpack.c.l.b16 %v88
    %v176 = vunpack.c.l.b16 %v89
    %v177 = vunpack.c.l.b16 %v90
    %v178 = vunpack.c.l.b16 %v91
    %v179 = vunpack.c.l.b16 %v92
    %v180 = vunpack.c.l.b16 %v93
    %v181 = vunpack.c.l.b16 %v94
    %v182 = vpack.c.b16 %v167, %v166
    %v183 = vpack.c.b16 %v169, %v168
    %v184 = vpack.c.b16 %v171, %v170
    %v185 = vpack.c.b16 %v173, %v172
    %v186 = vpack.c.b16 %v175, %v174
    %v187 = vpack.c.b16 %v177, %v176
    %v188 = vpack.c.b16 %v179, %v178
    %v189 = vpack.c.b16 %v181, %v180
    %198 = vmatprep.subr.bf16.mxu0 0
    %199 = vmatpush1.bf16.msra.mxu0 %v182
    %200 = vmatprep.subr.bf16.mxu0 0
    %201 = vmatpush1.bf16.msra.mxu0 %v183
    %202 = vmatprep.subr.bf16.mxu0 0
    %203 = vmatpush1.bf16.msra.mxu0 %v184
    %204 = vmatprep.subr.bf16.mxu0 0
    %205 = vmatpush1.bf16.msra.mxu0 %v185
    %206 = vmatprep.subr.bf16.mxu0 0
    %207 = vmatpush1.bf16.msra.mxu0 %v186
    %208 = vmatprep.subr.bf16.mxu0 0
    %209 = vmatpush1.bf16.msra.mxu0 %v187
    %210 = vmatprep.subr.bf16.mxu0 0
    %211 = vmatpush1.bf16.msra.mxu0 %v188
    %212 = vmatprep.subr.bf16.mxu0 0
    %213 = vmatpush1.bf16.msra.mxu0 %v189
    %214 = vmatprep.subr.bf16.mxu0 0
    %215 = vmatpush1.bf16.msra.mxu0 0
    %216 = vmatprep.subr.bf16.mxu0 0
    %217 = vmatpush1.bf16.msra.mxu0 0
    %218 = vmatprep.subr.bf16.mxu0 0
    %219 = vmatpush1.bf16.msra.mxu0 0
    %220 = vmatprep.subr.bf16.mxu0 0
    %221 = vmatpush1.bf16.msra.mxu0 0
    %222 = vmatprep.subr.bf16.mxu0 0
    %223 = vmatpush1.bf16.msra.mxu0 0
    %224 = vmatprep.subr.bf16.mxu0 0
    %225 = vmatpush1.bf16.msra.mxu0 0
    %226 = vmatprep.subr.bf16.mxu0 0
    %227 = vmatpush1.bf16.msra.mxu0 0
    %228 = vmatprep.subr.bf16.mxu0 0
    %229 = vmatpush1.bf16.msra.mxu0 0
    %230 = vmatprep.mubr.bf16.mxu0 0
    %231 = vmatmul.mubr.bf16.gmra.mrb[0].mxu0 %v134
    %v232 = vpop.f32.mrb[0].mxu0
    %v233 = vadd.f32 %v100, %v232
    %v234 = vpop.f32.mrb[0].mxu0
    %v235 = vpop.f32.mrb[0].mxu0
    %v236 = vadd.f32 %v100, %v235
    %v237 = vpop.f32.mrb[0].mxu0
    %238 = vmatprep.mubr.bf16.mxu0 0
    %239 = vmatmul.mubr.bf16.gmra.mrb[0].mxu0 %v135
    %v240 = vpop.f32.mrb[0].mxu0
    %v241 = vadd.f32 %v100, %v240
    %v242 = vpop.f32.mrb[0].mxu0
    %v243 = vpop.f32.mrb[0].mxu0
    %v244 = vadd.f32 %v100, %v243
    %v245 = vpop.f32.mrb[0].mxu0
    %246 = vmatprep.mubr.bf16.mxu0 0
    %247 = vmatmul.mubr.bf16.gmra.mrb[0].mxu0 %v136
    %v248 = vpop.f32.mrb[0].mxu0
    %v249 = vadd.f32 %v100, %v248
    %v250 = vpop.f32.mrb[0].mxu0
    %v251 = vpop.f32.mrb[0].mxu0
    %v252 = vadd.f32 %v100, %v251
    %v253 = vpop.f32.mrb[0].mxu0
    %254 = vmatprep.mubr.bf16.mxu0 0
    %255 = vmatmul.mubr.bf16.gmra.mrb[0].mxu0 %v137
    %v256 = vpop.f32.mrb[0].mxu0
    %v257 = vadd.f32 %v100, %v256
    %v258 = vpop.f32.mrb[0].mxu0
    %v259 = vpop.f32.mrb[0].mxu0
    %v260 = vadd.f32 %v100, %v259
    %v261 = vpop.f32.mrb[0].mxu0
    %262 = vmatprep.mubr.bf16.mxu0 0
    %263 = vmatmul.mubr.bf16.gmra.mrb[0].mxu0 %v138
    %v264 = vpop.f32.mrb[0].mxu0
    %v265 = vadd.f32 %v100, %v264
    %v266 = vpop.f32.mrb[0].mxu0
    %v267 = vpop.f32.mrb[0].mxu0
    %v268 = vadd.f32 %v100, %v267
    %v269 = vpop.f32.mrb[0].mxu0
    %270 = vmatprep.mubr.bf16.mxu0 0
    %271 = vmatmul.mubr.bf16.gmra.mrb[0].mxu0 %v139
    %v272 = vpop.f32.mrb[0].mxu0
    %v273 = vadd.f32 %v100, %v272
    %v274 = vpop.f32.mrb[0].mxu0
    %v275 = vpop.f32.mrb[0].mxu0
    %v276 = vadd.f32 %v100, %v275
    %v277 = vpop.f32.mrb[0].mxu0
    %278 = vmatprep.mubr.bf16.mxu0 0
    %279 = vmatmul.mubr.bf16.gmra.mrb[0].mxu0 %v140
    %v280 = vpop.f32.mrb[0].mxu0
    %v281 = vadd.f32 %v100, %v280
    %v282 = vpop.f32.mrb[0].mxu0
    %v283 = vpop.f32.mrb[0].mxu0
    %v284 = vadd.f32 %v100, %v283
    %v285 = vpop.f32.mrb[0].mxu0
    %286 = vmatprep.mubr.bf16.mxu0 0
    %287 = vmatmul.mubr.bf16.gmra.mrb[0].mxu0 %v141
    %v288 = vpop.f32.mrb[0].mxu0
    %v289 = vadd.f32 %v100, %v288
    %v290 = vpop.f32.mrb[0].mxu0
    %v291 = vpop.f32.mrb[0].mxu0
    %v292 = vadd.f32 %v100, %v291
    %v293 = vpop.f32.mrb[0].mxu0
    %294 = vdwg.mxu0
    %v295 = vtanh.pop %v233
    %v296 = vtanh.pop %v236
    %v297 = vtanh.pop %v241
    %v298 = vtanh.pop %v244
    %v299 = vtanh.pop %v249
    %v300 = vtanh.pop %v252
    %v301 = vtanh.pop %v257
    %v302 = vtanh.pop %v260
    %v303 = vtanh.pop %v265
    %v304 = vtanh.pop %v268
    %v305 = vtanh.pop %v273
    %v306 = vtanh.pop %v276
    %v307 = vtanh.pop %v281
    %v308 = vtanh.pop %v284
    %v309 = vtanh.pop %v289
    %v310 = vtanh.pop %v292
    %v311 = vpack.c.bf16 %v296, %v295
    %v312 = vpack.c.bf16 %v298, %v297
    %v313 = vpack.c.bf16 %v300, %v299
    %v314 = vpack.c.bf16 %v302, %v301
    %v315 = vpack.c.bf16 %v304, %v303
    %v316 = vpack.c.bf16 %v306, %v305
    %v317 = vpack.c.bf16 %v308, %v307
    %v318 = vpack.c.bf16 %v310, %v309
    %v319 = vld [vmem:[#allocation7] sm:$0xf]
    %v320 = vld [vmem:[#allocation7 + $0x4] sm:$0xf]
    %v321 = vld [vmem:[#allocation7 + $0x8] sm:$0xf]
    %v322 = vld [vmem:[#allocation7 + $0xc] sm:$0xf]
    %v323 = vld [vmem:[#allocation7 + $0x10] sm:$0xf]
    %v324 = vld [vmem:[#allocation7 + $0x14] sm:$0xf]
    %v325 = vld [vmem:[#allocation7 + $0x18] sm:$0xf]
    %v326 = vld [vmem:[#allocation7 + $0x1c] sm:$0xf]
    %v327 = vld [vmem:[#allocation7 + $0x20] sm:$0xf]
    %v328 = vld [vmem:[#allocation7 + $0x24] sm:$0xf]
    %v329 = vld [vmem:[#allocation7 + $0x28] sm:$0xf]
    %v330 = vld [vmem:[#allocation7 + $0x2c] sm:$0xf]
    %v331 = vld [vmem:[#allocation7 + $0x30] sm:$0xf]
    %v332 = vld [vmem:[#allocation7 + $0x34] sm:$0xf]
    %v333 = vld [vmem:[#allocation7 + $0x38] sm:$0xf]
    %v334 = vld [vmem:[#allocation7 + $0x3c] sm:$0xf]
    %v335 = vld [vmem:[%s4] sm:$0x1]
    %v337 = vlaneseq
    %v338 = vshrl.u32 %v337, 7
    %v339 = vsub.s32 0, %v338
    %v340 = vrot.slane %v335, %v339
    %v358 = vunpack.c.l.b16 %v319
    %v359 = vunpack.c.l.b16 %v320
    %v360 = vunpack.c.l.b16 %v321
    %v361 = vunpack.c.l.b16 %v322
    %v362 = vunpack.c.l.b16 %v323
    %v363 = vunpack.c.l.b16 %v324
    %v364 = vunpack.c.l.b16 %v325
    %v365 = vunpack.c.l.b16 %v326
    %v366 = vunpack.c.l.b16 %v327
    %v367 = vunpack.c.l.b16 %v328
    %v368 = vunpack.c.l.b16 %v329
    %v369 = vunpack.c.l.b16 %v330
    %v370 = vunpack.c.l.b16 %v331
    %v371 = vunpack.c.l.b16 %v332
    %v372 = vunpack.c.l.b16 %v333
    %v373 = vunpack.c.l.b16 %v334
    %v374 = vpack.c.b16 %v359, %v358
    %v375 = vpack.c.b16 %v361, %v360
    %v376 = vpack.c.b16 %v363, %v362
    %v377 = vpack.c.b16 %v365, %v364
    %v378 = vpack.c.b16 %v367, %v366
    %v379 = vpack.c.b16 %v369, %v368
    %v380 = vpack.c.b16 %v371, %v370
    %v381 = vpack.c.b16 %v373, %v372
    %390 = vmatprep.subr.bf16.mxu0 0
    %391 = vmatpush1.bf16.msra.mxu0 %v374
    %392 = vmatprep.subr.bf16.mxu0 0
    %393 = vmatpush1.bf16.msra.mxu0 %v375
    %394 = vmatprep.subr.bf16.mxu0 0
    %395 = vmatpush1.bf16.msra.mxu0 %v376
    %396 = vmatprep.subr.bf16.mxu0 0
    %397 = vmatpush1.bf16.msra.mxu0 %v377
    %398 = vmatprep.subr.bf16.mxu0 0
    %399 = vmatpush1.bf16.msra.mxu0 %v378
    %400 = vmatprep.subr.bf16.mxu0 0
    %401 = vmatpush1.bf16.msra.mxu0 %v379
    %402 = vmatprep.subr.bf16.mxu0 0
    %403 = vmatpush1.bf16.msra.mxu0 %v380
    %404 = vmatprep.subr.bf16.mxu0 0
    %405 = vmatpush1.bf16.msra.mxu0 %v381
    %406 = vmatprep.subr.bf16.mxu0 0
    %407 = vmatpush1.bf16.msra.mxu0 0
    %408 = vmatprep.subr.bf16.mxu0 0
    %409 = vmatpush1.bf16.msra.mxu0 0
    %410 = vmatprep.subr.bf16.mxu0 0
    %411 = vmatpush1.bf16.msra.mxu0 0
    %412 = vmatprep.subr.bf16.mxu0 0
    %413 = vmatpush1.bf16.msra.mxu0 0
    %414 = vmatprep.subr.bf16.mxu0 0
    %415 = vmatpush1.bf16.msra.mxu0 0
    %416 = vmatprep.subr.bf16.mxu0 0
    %417 = vmatpush1.bf16.msra.mxu0 0
    %418 = vmatprep.subr.bf16.mxu0 0
    %419 = vmatpush1.bf16.msra.mxu0 0
    %420 = vmatprep.subr.bf16.mxu0 0
    %421 = vmatpush1.bf16.msra.mxu0 0
    %422 = vmatprep.mubr.bf16.mxu0 0
    %423 = vmatmul.mubr.bf16.gmra.mrb[0].mxu0 %v311
    %v424 = vpop.f32.mrb[0].mxu0
    %v425 = vadd.f32 %v340, %v424
    %v426 = vpop.f32.mrb[0].mxu0
    %v427 = vpop.f32.mrb[0].mxu0
    %v428 = vadd.f32 %v340, %v427
    %v429 = vpop.f32.mrb[0].mxu0
    %430 = vmatprep.mubr.bf16.mxu0 0
    %431 = vmatmul.mubr.bf16.gmra.mrb[0].mxu0 %v312
    %v432 = vpop.f32.mrb[0].mxu0
    %v433 = vadd.f32 %v340, %v432
    %v434 = vpop.f32.mrb[0].mxu0
    %v435 = vpop.f32.mrb[0].mxu0
    %v436 = vadd.f32 %v340, %v435
    %v437 = vpop.f32.mrb[0].mxu0
    %438 = vmatprep.mubr.bf16.mxu0 0
    %439 = vmatmul.mubr.bf16.gmra.mrb[0].mxu0 %v313
    %v440 = vpop.f32.mrb[0].mxu0
    %v441 = vadd.f32 %v340, %v440
    %v442 = vpop.f32.mrb[0].mxu0
    %v443 = vpop.f32.mrb[0].mxu0
    %v444 = vadd.f32 %v340, %v443
    %v445 = vpop.f32.mrb[0].mxu0
    %446 = vmatprep.mubr.bf16.mxu0 0
    %447 = vmatmul.mubr.bf16.gmra.mrb[0].mxu0 %v314
    %v448 = vpop.f32.mrb[0].mxu0
    %v449 = vadd.f32 %v340, %v448
    %v450 = vpop.f32.mrb[0].mxu0
    %v451 = vpop.f32.mrb[0].mxu0
    %v452 = vadd.f32 %v340, %v451
    %v453 = vpop.f32.mrb[0].mxu0
    %454 = vmatprep.mubr.bf16.mxu0 0
    %455 = vmatmul.mubr.bf16.gmra.mrb[0].mxu0 %v315
    %v456 = vpop.f32.mrb[0].mxu0
    %v457 = vadd.f32 %v340, %v456
    %v458 = vpop.f32.mrb[0].mxu0
    %v459 = vpop.f32.mrb[0].mxu0
    %v460 = vadd.f32 %v340, %v459
    %v461 = vpop.f32.mrb[0].mxu0
    %462 = vmatprep.mubr.bf16.mxu0 0
    %463 = vmatmul.mubr.bf16.gmra.mrb[0].mxu0 %v316
    %v464 = vpop.f32.mrb[0].mxu0
    %v465 = vadd.f32 %v340, %v464
    %v466 = vpop.f32.mrb[0].mxu0
    %v467 = vpop.f32.mrb[0].mxu0
    %v468 = vadd.f32 %v340, %v467
    %v469 = vpop.f32.mrb[0].mxu0
    %470 = vmatprep.mubr.bf16.mxu0 0
    %471 = vmatmul.mubr.bf16.gmra.mrb[0].mxu0 %v317
    %v472 = vpop.f32.mrb[0].mxu0
    %v473 = vadd.f32 %v340, %v472
    %v474 = vpop.f32.mrb[0].mxu0
    %v475 = vpop.f32.mrb[0].mxu0
    %v476 = vadd.f32 %v340, %v475
    %v477 = vpop.f32.mrb[0].mxu0
    %478 = vmatprep.mubr.bf16.mxu0 0
    %479 = vmatmul.mubr.bf16.gmra.mrb[0].mxu0 %v318
    %v480 = vpop.f32.mrb[0].mxu0
    %v481 = vadd.f32 %v340, %v480
    %v482 = vpop.f32.mrb[0].mxu0
    %v483 = vpop.f32.mrb[0].mxu0
    %v484 = vadd.f32 %v340, %v483
    %v485 = vpop.f32.mrb[0].mxu0
    %486 = vdwg.mxu0
    %v487 = vpack.c.bf16 %v428, %v425
    %v488 = vpack.c.bf16 %v436, %v433
    %v489 = vpack.c.bf16 %v444, %v441
    %v490 = vpack.c.bf16 %v452, %v449
    %v491 = vpack.c.bf16 %v460, %v457
    %v492 = vpack.c.bf16 %v468, %v465
    %v493 = vpack.c.bf16 %v476, %v473
    %v494 = vpack.c.bf16 %v484, %v481
    %v503 = vunpack.c.l.b16 %v487
    %v504 = vunpack.c.h.b16 %v487
    %v505 = vunpack.c.l.b16 %v488
    %v506 = vunpack.c.h.b16 %v488
    %v507 = vunpack.c.l.b16 %v489
    %v508 = vunpack.c.h.b16 %v489
    %v509 = vunpack.c.l.b16 %v490
    %v510 = vunpack.c.h.b16 %v490
    %v511 = vunpack.c.l.b16 %v491
    %v512 = vunpack.c.h.b16 %v491
    %v513 = vunpack.c.l.b16 %v492
    %v514 = vunpack.c.h.b16 %v492
    %v515 = vunpack.c.l.b16 %v493
    %v516 = vunpack.c.h.b16 %v493
    %v517 = vunpack.c.l.b16 %v494
    %v518 = vunpack.c.h.b16 %v494
    %v519 = vpack.c.b16 %v503, %v503
    %v520 = vpack.c.b16 %v504, %v504
    %v521 = vpack.c.b16 %v505, %v505
    %v522 = vpack.c.b16 %v506, %v506
    %v523 = vpack.c.b16 %v507, %v507
    %v524 = vpack.c.b16 %v508, %v508
    %v525 = vpack.c.b16 %v509, %v509
    %v526 = vpack.c.b16 %v510, %v510
    %v527 = vpack.c.b16 %v511, %v511
    %v528 = vpack.c.b16 %v512, %v512
    %v529 = vpack.c.b16 %v513, %v513
    %v530 = vpack.c.b16 %v514, %v514
    %v531 = vpack.c.b16 %v515, %v515
    %v532 = vpack.c.b16 %v516, %v516
    %v533 = vpack.c.b16 %v517, %v517
    %v534 = vpack.c.b16 %v518, %v518
    %551 = vst [vmem:[#allocation8] sm:$0xf] %v519
    %552 = vst [vmem:[#allocation8 + $0x4] sm:$0xf] %v520
    %553 = vst [vmem:[#allocation8 + $0x8] sm:$0xf] %v521
    %554 = vst [vmem:[#allocation8 + $0xc] sm:$0xf] %v522
    %555 = vst [vmem:[#allocation8 + $0x10] sm:$0xf] %v523
    %556 = vst [vmem:[#allocation8 + $0x14] sm:$0xf] %v524
    %557 = vst [vmem:[#allocation8 + $0x18] sm:$0xf] %v525
    %558 = vst [vmem:[#allocation8 + $0x1c] sm:$0xf] %v526
    %559 = vst [vmem:[#allocation8 + $0x20] sm:$0xf] %v527
    %560 = vst [vmem:[#allocation8 + $0x24] sm:$0xf] %v528
    %561 = vst [vmem:[#allocation8 + $0x28] sm:$0xf] %v529
    %562 = vst [vmem:[#allocation8 + $0x2c] sm:$0xf] %v530
    %563 = vst [vmem:[#allocation8 + $0x30] sm:$0xf] %v531
    %564 = vst [vmem:[#allocation8 + $0x34] sm:$0xf] %v532
    %565 = vst [vmem:[#allocation8 + $0x38] sm:$0xf] %v533
    %566 = vst [vmem:[#allocation8 + $0x3c] sm:$0xf] %v534
    // Predicated region
    $region34: #{tpu_custom_call.1} parent=1 // pred_check
      _
    $region35: #{tpu_custom_call.1} parent=1 // pred_check_branch
      %568 = sbr.rel (0) target = $region37
    $region36: #{tpu_custom_call.1} parent=1 // pred_region
      %s570 = ssub.s32 1024, 1024
      %571 = vsyncadd [#allocation4], %s570
      %s572 = sshll.u32 [#allocation8], 4
      %s573 = int_to_ptr.vmem [resolvable:$true] %s572
      %578 = dma.vmem_to_hbm [thread:$0]  %s573, 1024, %s5, [#allocation4], 64, 64, 4
    $region37: #{tpu_custom_call.1} parent=1 // pred_fallthru
      _
    // Predicated region
    $region38: #{tpu_custom_call.1} parent=1 // pred_check
      _
    $region39: #{tpu_custom_call.1} parent=1 // pred_check_branch
      %580 = sbr.rel (0) target = $region41
    $region40: #{tpu_custom_call.1} parent=1 // pred_region
      %581 = dma.done [#allocation4], 1024
    $region41: #{tpu_custom_call.1} parent=1 // pred_fallthru
      _
    %582 = vsyncpa [#allocation3], 1
    %583 = vsyncpa [#allocation6], 1
    %584 = vsyncpa [#allocation4], 1

</llo_original>
